<compile_context>
chip_gen: v6e
topology: v6e:2x2x1
jax: 0.10.0
libtpu: 0.0.40
codegen_flags: <defaults>
</compile_context>

<pallas_src>
import math

import jax
import jax.numpy as jnp
from jax.experimental import pallas as pl
from jax.experimental.pallas import tpu as pltpu


# ---------------------------------------------------------------------------
# Small helpers
# ---------------------------------------------------------------------------

def _round_up(x, m):
    return ((x + m - 1) // m) * m


def _pad_to(a, shape):
    pads = [(0, s - d) for d, s in zip(a.shape, shape)]
    return jnp.pad(a, pads)


def _pick_tile(dim, cap, align):
    """Largest tile <= cap (multiple of `align`) that minimises padding."""
    padded = _round_up(dim, align)
    if padded <= cap:
        return padded
    n_blocks = -(-padded // cap)
    return _round_up(-(-padded // n_blocks), align)


def _weight_tiles(out_features, in_features):
    """(tn, tk, Np, Kp): fixed at prepare time, independent of batch."""
    tn = _pick_tile(out_features, 512, 128)
    tk = _pick_tile(in_features, 512, 128)
    Np = _round_up(out_features, tn)
    Kp = _round_up(in_features, tk)
    # v7x has 2 TensorCores: make sure the parallel grid has >= 2 N-blocks
    # whenever that costs no extra padding (near-free on v5e/v6e).
    if Np // tn < 2 and Np >= 256:
        cand = (Np // 2) // 128 * 128
        while cand > 128 and Np % cand != 0:
            cand -= 128
        tn = max(cand, 128)
    return tn, tk, Np, Kp


def _pick_tm(batch):
    # Large tm => weights are streamed fewer times; 16 matches bf16 sublane
    # packing. Cap 512 keeps the double-buffered working set small everywhere.
    return _pick_tile(batch, 512, 16)


# ---------------------------------------------------------------------------
# Per-tile compute (shared by the single-K and accumulating kernels)
# ---------------------------------------------------------------------------

def _factorised_tile(x_ref, xeps_ref, wmu_ref, wsig_ref, eout_ref):
    # Rank-1 fold: x@Wmu_t + eps_out * (x*eps_in)@Wsig_t, f32 accumulation.
    acc = jnp.dot(x_ref[...], wmu_ref[...], preferred_element_type=jnp.float32)
    acc = acc + eout_ref[...] * jnp.dot(xeps_ref[...], wsig_ref[...],
                                        preferred_element_type=jnp.float32)
    return acc


def _full_eps_tile(x_ref, wmu_ref, wsig_ref, weps_ref):
    # Non-factorised noise: combine in the streamed (narrow) dtype; Mosaic
    # upcasts on chips without bf16 VALU (v5e).
    w = wmu_ref[...] + wsig_ref[...] * weps_ref[...]
    return jnp.dot(x_ref[...], w, preferred_element_type=jnp.float32)


def _plain_tile(x_ref, w_ref):
    # Eval-mode forward: plain linear with W_mu.
    return jnp.dot(x_ref[...], w_ref[...], preferred_element_type=jnp.float32)


def _make_kernel(tile_fn, *, single_k):
    """Wrap a tile function into a Pallas kernel body.

    Kernel args: (*operand_refs, bias_ref, out_ref[, acc_ref]).
    """
    if single_k:
        def kernel(*refs):
            *op_refs, b_ref, o_ref = refs
            acc = tile_fn(*op_refs)
            o_ref[...] = (acc + b_ref[...]).astype(o_ref.dtype)
        return kernel

    def kernel(*refs):
        *op_refs, b_ref, o_ref, acc_ref = refs
        k = pl.program_id(2)

        @pl.when(k == 0)
        def _():
            acc_ref[...] = jnp.zeros_like(acc_ref)

        acc_ref[...] += tile_fn(*op_refs)

        @pl.when(k == pl.num_programs(2) - 1)
        def _():
            o_ref[...] = (acc_ref[...] + b_ref[...]).astype(o_ref.dtype)

    return kernel


# ---------------------------------------------------------------------------
# Generic tiled (M, N, K) pallas_call
# ---------------------------------------------------------------------------

def _tiled_linear_call(tile_fn, inputs, in_specs, bias_row, out_dtype,
                       Mp, Np, Kp, tm, tn, tk):
    grid = (Mp // tm, Np // tn, Kp // tk)
    single_k = grid[2] == 1
    kernel = _make_kernel(tile_fn, single_k=single_k)
    scratch = [] if single_k else [pltpu.VMEM((tm, tn), jnp.float32)]

    bias_spec = pl.BlockSpec((1, tn), lambda i, j, k: (0, j))
    out_spec = pl.BlockSpec((tm, tn), lambda i, j, k: (i, j))

    return pl.pallas_call(
        kernel,
        out_shape=jax.ShapeDtypeStruct((Mp, Np), out_dtype),
        grid_spec=pltpu.PrefetchScalarGridSpec(
            num_scalar_prefetch=0,
            grid=grid,
            in_specs=list(in_specs) + [bias_spec],
            out_specs=out_spec,
            scratch_shapes=scratch),
        compiler_params=pltpu.CompilerParams(
            dimension_semantics=("parallel", "parallel", "arbitrary"),
            # <= physical VMEM on all gens; above v5e's 16 MiB scoped default.
            vmem_limit_bytes=32 * 1024 * 1024),
    )(*inputs, bias_row)


# ---------------------------------------------------------------------------
# NoisyLinear module (params + noise + prepared/padded device tensors)
# ---------------------------------------------------------------------------

def _scale_noise(key, size):
    # PyTorch: x.sign() * x.abs().sqrt()
    x = jax.random.normal(key, (size,), dtype=jnp.float32)
    return jnp.sign(x) * jnp.sqrt(jnp.abs(x))


class NoisyLinearPallas:
    """NoisyNet linear layer with a Pallas TPU forward.

    Parameters are kept as f32 masters; padded/(K,N)-transposed/cast copies
    are prepared ONCE (init / sample_noise), so the per-call work is only
    padding+casting x and the pallas_call itself.
    """

    def __init__(self, key, in_features, out_features, std_init=0.4,
                 factorised_noise=True, matmul_dtype=jnp.bfloat16):
        self.in_features = in_features
        self.out_features = out_features
        self.std_init = std_init
        self.factorised_noise = factorised_noise
        self.matmul_dtype = matmul_dtype

        self.tn, self.tk, self.Np, self.Kp = _weight_tiles(out_features, in_features)

        k_params, k_noise = jax.random.split(key)
        self._reset_parameters(k_params)
        self._prepare_static()
        self.sample_noise(k_noise)

    # -- init / noise ------------------------------------------------------

    def _reset_parameters(self, key):
        k_wmu, k_bmu = jax.random.split(key)
        mu_range = 1.0 / math.sqrt(self.in_features)
        sigma0 = self.std_init / math.sqrt(self.in_features)
        self.weight_mu = jax.random.uniform(
            k_wmu, (self.out_features, self.in_features), jnp.float32,
            -mu_range, mu_range)
        self.weight_sigma = jnp.full(
            (self.out_features, self.in_features), sigma0, jnp.float32)
        self.bias_mu = jax.random.uniform(
            k_bmu, (self.out_features,), jnp.float32, -mu_range, mu_range)
        self.bias_sigma = jnp.full((self.out_features,), sigma0, jnp.float32)

    def _prepare_static(self):
        Kp, Np = self.Kp, self.Np
        # Pad + transpose to (K, N) + cast ONCE; reused by every forward call.
        self.wmu_t = _pad_to(self.weight_mu.T, (Kp, Np)).astype(self.matmul_dtype)
        self.wsig_t = _pad_to(self.weight_sigma.T, (Kp, Np)).astype(self.matmul_dtype)
        self.bias_mu_row = _pad_to(self.bias_mu.reshape(1, -1), (1, Np))  # f32 (eval)

    def sample_noise(self, key):
        Kp, Np = self.Kp, self.Np
        if self.factorised_noise:
            k_in, k_out = jax.random.split(key)
            self.eps_in = _scale_noise(k_in, self.in_features)
            self.eps_out = _scale_noise(k_out, self.out_features)
            # NOTE: the full (out, in) weight_epsilon is never materialised.
            self.eps_in_row = _pad_to(self.eps_in.reshape(1, -1), (1, Kp))    # f32
            self.eps_out_row = _pad_to(self.eps_out.reshape(1, -1), (1, Np))  # f32
            b_eff = self.bias_mu + self.bias_sigma * self.eps_out
        else:
            k_w, k_b = jax.random.split(key)
            self.weight_epsilon = jax.random.normal(
                k_w, (self.out_features, self.in_features), jnp.float32)
            self.bias_epsilon = jax.random.normal(
                k_b, (self.out_features,), jnp.float32)
            self.weps_t = _pad_to(self.weight_epsilon.T,
                                  (Kp, Np)).astype(self.matmul_dtype)
            b_eff = self.bias_mu + self.bias_sigma * self.bias_epsilon
        self.b_eff_row = _pad_to(b_eff.reshape(1, -1), (1, Np))               # f32

    # -- forward -----------------------------------------------------------

    def __call__(self, x, training=True):
        B, K = x.shape
        assert K == self.in_features
        tn, tk, Np, Kp = self.tn, self.tk, self.Np, self.Kp
        tm = _pick_tm(B)
        Mp = _round_up(B, tm)

        x_p = _pad_to(x, (Mp, Kp))
        x_md = x_p.astype(self.matmul_dtype)

        x_spec = pl.BlockSpec((tm, tk), lambda i, j, k: (i, k))
        w_spec = pl.BlockSpec((tk, tn), lambda i, j, k: (k, j))
        row_spec = pl.BlockSpec((1, tn), lambda i, j, k: (0, j))

        if not training:
            out_p = _tiled_linear_call(
                _plain_tile, [x_md, self.wmu_t], [x_spec, w_spec],
                self.bias_mu_row, x.dtype, Mp, Np, Kp, tm, tn, tk)
        elif self.factorised_noise:
            # Fold eps_in into x once (f32 multiply, then cast for the MXU).
            xeps_md = (x_p * self.eps_in_row).astype(self.matmul_dtype)
            out_p = _tiled_linear_call(
                _factorised_tile,
                [x_md, xeps_md, self.wmu_t, self.wsig_t, self.eps_out_row],
                [x_spec, x_spec, w_spec, w_spec, row_spec],
                self.b_eff_row, x.dtype, Mp, Np, Kp, tm, tn, tk)
        else:
            out_p = _tiled_linear_call(
                _full_eps_tile,
                [x_md, self.wmu_t, self.wsig_t, self.weps_t],
                [x_spec, w_spec, w_spec, w_spec],
                self.b_eff_row, x.dtype, Mp, Np, Kp, tm, tn, tk)

        return out_p[:B, :self.out_features]


# ---------------------------------------------------------------------------
# Self-test
# ---------------------------------------------------------------------------

if __name__ == "__main__":
    key = jax.random.PRNGKey(0)
    k_layer, k_layer_full, k_x, k_x2 = jax.random.split(key, 4)

    # Small shapes consistent with the module.
    batch, in_features, out_features = 8, 32, 64
    x = jax.random.normal(k_x, (batch, in_features), dtype=jnp.float32)

    # Same key -> identical params/noise; only the MXU stream dtype differs.
    layer_f32 = NoisyLinearPallas(k_layer, in_features, out_features,
                                  matmul_dtype=jnp.float32)
    layer_bf16 = NoisyLinearPallas(k_layer, in_features, out_features,
                                   matmul_dtype=jnp.bfloat16)

    # Pure-JAX reference (PyTorch training-mode forward, factorised noise).
    w_eps_ref = jnp.outer(layer_f32.eps_out, layer_f32.eps_in)
    w_eff = layer_f32.weight_mu + layer_f32.weight_sigma * w_eps_ref
    b_eff = layer_f32.bias_mu + layer_f32.bias_sigma * layer_f32.eps_out
    y_ref = x @ w_eff.T + b_eff

    # 1) Factorised noise, f32 streams (accurate path).
    y_f32 = jax.block_until_ready(layer_f32(x, training=True))
    assert y_f32.shape == (batch, out_features)
    assert jnp.allclose(y_f32, y_ref, atol=1e-4, rtol=1e-4), "f32 factorised mismatch"

    # 2) Factorised noise, bf16 streams (fast path).
    y_bf16 = jax.block_until_ready(layer_bf16(x, training=True))
    assert jnp.allclose(y_bf16, y_ref, atol=5e-2, rtol=5e-2), "bf16 factorised mismatch"

    # 3) Eval-mode forward (plain linear with W_mu, b_mu).
    y_eval = jax.block_until_ready(layer_f32(x, training=False))
    y_eval_ref = x @ layer_f32.weight_mu.T + layer_f32.bias_mu
    assert jnp.allclose(y_eval, y_eval_ref, atol=1e-4, rtol=1e-4), "eval mismatch"

    # 4) Non-factorised (full weight_epsilon) path, f32 streams.
    layer_full = NoisyLinearPallas(k_layer_full, in_features, out_features,
                                   factorised_noise=False,
                                   matmul_dtype=jnp.float32)
    y_full = jax.block_until_ready(layer_full(x, training=True))
    wf = layer_full.weight_mu + layer_full.weight_sigma * layer_full.weight_epsilon
    bf = layer_full.bias_mu + layer_full.bias_sigma * layer_full.bias_epsilon
    y_full_ref = x @ wf.T + bf
    assert jnp.allclose(y_full, y_full_ref, atol=1e-4, rtol=1e-4), "full-eps mismatch"

    # 5) Larger shape exercising the K-accumulator, the tn megacore split and
    #    the bf16 weight streaming.
    B2, K2, N2 = 256, 1024, 512
    layer2 = NoisyLinearPallas(jax.random.PRNGKey(1), K2, N2,
                               matmul_dtype=jnp.bfloat16)
    x2 = jax.random.normal(k_x2, (B2, K2), dtype=jnp.float32)
    y2 = jax.block_until_ready(layer2(x2, training=True))
    w2 = layer2.weight_mu + layer2.weight_sigma * jnp.outer(layer2.eps_out,
                                                            layer2.eps_in)
    b2 = layer2.bias_mu + layer2.bias_sigma * layer2.eps_out
    y2_ref = x2 @ w2.T + b2
    assert y2.shape == (B2, N2)
    assert jnp.allclose(y2, y2_ref, atol=1e-1, rtol=1e-1), "tiled bf16 mismatch"

    print("KERNEL_OK")
</pallas_src>

<mosaic_0001>
module attributes {stable_mosaic.version = 11 : i64} {
  func.func @kernel(%arg0: i32, %arg1: i32, %arg2: i32, %arg3: memref<16x128xf32, #tpu.memory_space<vmem>>, %arg4: memref<16x128xf32, #tpu.memory_space<vmem>>, %arg5: memref<128x128xf32, #tpu.memory_space<vmem>>, %arg6: memref<128x128xf32, #tpu.memory_space<vmem>>, %arg7: memref<1x128xf32, #tpu.memory_space<vmem>>, %arg8: memref<1x128xf32, #tpu.memory_space<vmem>>, %arg9: memref<16x128xf32, #tpu.memory_space<vmem>>) attributes {dimension_semantics = [#tpu.dimension_semantics<parallel>, #tpu.dimension_semantics<parallel>, #tpu.dimension_semantics<arbitrary>], iteration_bounds = array<i64: 1, 1, 1>, scalar_prefetch = 0 : i64, scratch_operands = 0 : i64, tpu.core_type = #tpu.core_type<tc>, window_params = [{transform_indices = @transform_0, window_bounds = array<i64: 16, 128>}, {transform_indices = @transform_1, window_bounds = array<i64: 16, 128>}, {transform_indices = @transform_2, window_bounds = array<i64: 128, 128>}, {transform_indices = @transform_3, window_bounds = array<i64: 128, 128>}, {transform_indices = @transform_4, window_bounds = array<i64: 1, 128>}, {transform_indices = @transform_5, window_bounds = array<i64: 1, 128>}, {transform_indices = @transform_6, window_bounds = array<i64: 16, 128>}]} {
    %c0 = arith.constant 0 : index
    %c0_0 = arith.constant 0 : index
    %0 = vector.load %arg3[%c0, %c0_0] : memref<16x128xf32, #tpu.memory_space<vmem>>, vector<16x128xf32>
    %c0_1 = arith.constant 0 : index
    %c0_2 = arith.constant 0 : index
    %1 = vector.load %arg5[%c0_1, %c0_2] : memref<128x128xf32, #tpu.memory_space<vmem>>, vector<128x128xf32>
    %cst = arith.constant dense<0.000000e+00> : vector<16x128xf32>
    %2 = tpu.matmul %0, %1, %cst {dimension_numbers = #tpu.dot_dimension_numbers<[1], [0], [0], [1], [0, 0, 1, 1], [], []>} : vector<16x128xf32>, vector<128x128xf32>, vector<16x128xf32> -> vector<16x128xf32>
    %c0_3 = arith.constant 0 : index
    %c0_4 = arith.constant 0 : index
    %3 = vector.load %arg7[%c0_3, %c0_4] : memref<1x128xf32, #tpu.memory_space<vmem>>, vector<1x128xf32>
    %c0_5 = arith.constant 0 : index
    %c0_6 = arith.constant 0 : index
    %4 = vector.load %arg4[%c0_5, %c0_6] : memref<16x128xf32, #tpu.memory_space<vmem>>, vector<16x128xf32>
    %c0_7 = arith.constant 0 : index
    %c0_8 = arith.constant 0 : index
    %5 = vector.load %arg6[%c0_7, %c0_8] : memref<128x128xf32, #tpu.memory_space<vmem>>, vector<128x128xf32>
    %cst_9 = arith.constant dense<0.000000e+00> : vector<16x128xf32>
    %6 = tpu.matmul %4, %5, %cst_9 {dimension_numbers = #tpu.dot_dimension_numbers<[1], [0], [0], [1], [0, 0, 1, 1], [], []>} : vector<16x128xf32>, vector<128x128xf32>, vector<16x128xf32> -> vector<16x128xf32>
    %7 = vector.broadcast %3 : vector<1x128xf32> to vector<16x128xf32>
    %8 = arith.mulf %7, %6 : vector<16x128xf32>
    %9 = arith.addf %2, %8 : vector<16x128xf32>
    %c0_10 = arith.constant 0 : index
    %c0_11 = arith.constant 0 : index
    %10 = vector.load %arg8[%c0_10, %c0_11] : memref<1x128xf32, #tpu.memory_space<vmem>>, vector<1x128xf32>
    %11 = vector.broadcast %10 : vector<1x128xf32> to vector<16x128xf32>
    %12 = arith.addf %9, %11 : vector<16x128xf32>
    %c0_12 = arith.constant 0 : index
    %c0_13 = arith.constant 0 : index
    %13 = vector.load %arg9[%c0_12, %c0_13] : memref<16x128xf32, #tpu.memory_space<vmem>>, vector<16x128xf32>
    tpu.vector_store %arg9[%c0_12, %c0_13], %12 {strides = array<i32>} : memref<16x128xf32, #tpu.memory_space<vmem>>, vector<16x128xf32>,
    return
  }
  func.func @transform_0(%arg0: i32, %arg1: i32, %arg2: i32) -> (i32, i32) {
    %c0_i32 = arith.constant 0 : i32
    return %arg0, %arg2 : i32, i32
  }
  func.func @transform_1(%arg0: i32, %arg1: i32, %arg2: i32) -> (i32, i32) {
    %c0_i32 = arith.constant 0 : i32
    return %arg0, %arg2 : i32, i32
  }
  func.func @transform_2(%arg0: i32, %arg1: i32, %arg2: i32) -> (i32, i32) {
    %c0_i32 = arith.constant 0 : i32
    return %arg2, %arg1 : i32, i32
  }
  func.func @transform_3(%arg0: i32, %arg1: i32, %arg2: i32) -> (i32, i32) {
    %c0_i32 = arith.constant 0 : i32
    return %arg2, %arg1 : i32, i32
  }
  func.func @transform_4(%arg0: i32, %arg1: i32, %arg2: i32) -> (i32, i32) {
    %c0_i32 = arith.constant 0 : i32
    %c0_i32_0 = arith.constant 0 : i32
    return %c0_i32, %arg1 : i32, i32
  }
  func.func @transform_5(%arg0: i32, %arg1: i32, %arg2: i32) -> (i32, i32) {
    %c0_i32 = arith.constant 0 : i32
    %c0_i32_0 = arith.constant 0 : i32
    return %c0_i32, %arg1 : i32, i32
  }
  func.func @transform_6(%arg0: i32, %arg1: i32, %arg2: i32) -> (i32, i32) {
    %c0_i32 = arith.constant 0 : i32
    return %arg0, %arg1 : i32, i32
  }
}

</mosaic_0001>

<llo_original>
// kernel: tpu_custom_call.1
$region0: #{tpu_custom_call.1}
  #allocation0 [shape = 'u32[]', space=smem, size = 0x4, offset = 0x4, fixed_abs, tag = 'smem constant byte address 0x4 - core index']
  #allocation1 [shape = 'u32[144,128]{1,0:T(1,128)}', space=vmem, size = 0x12000, scoped, tag = 'internal scratch']
  %s0 = inlined_call_operand.hbm [shape: f32[16,128], index: 0, kind: input, shape index: {}]
  %s1 = inlined_call_operand.hbm [shape: f32[16,128], index: 1, kind: input, shape index: {}]
  %s2 = inlined_call_operand.hbm [shape: f32[128,128], index: 2, kind: input, shape index: {}]
  %s3 = inlined_call_operand.hbm [shape: f32[128,128], index: 3, kind: input, shape index: {}]
  %s4 = inlined_call_operand.vmem [shape: f32[1,128], index: 4, kind: input, shape index: {}]
  %s5 = inlined_call_operand.vmem [shape: f32[1,128], index: 5, kind: input, shape index: {}]
  %s6 = inlined_call_operand.hbm [shape: f32[16,128], index: 6, kind: output, shape index: {}]
  %s7 = sld [smem:[#allocation0]]
  $region50: #{tpu_custom_call.1} parent=0
    _
  %s9 = ssub.s32 1, %s7
  %s10 = scalar_select 0, %s9, %s7
  $region1: #{tpu_custom_call.1} parent=0
    #allocation2 [shape = 'u8[8192]{0}', space=vmem, size = 0x2000, scoped, tag = 'input window, operand 0, single buffered']
    #allocation3 [shape = 's32[1]{0}', space=sflag, size = 0x4, scoped, tag = 'scoped memory for tpu_custom_call.1']
    #allocation4 [shape = 's32[1]{0}', space=sflag, size = 0x4, scoped, tag = 'scoped memory for tpu_custom_call.1']
    #allocation5 [shape = 'u8[8192]{0}', space=vmem, size = 0x2000, scoped, tag = 'input window, operand 1, single buffered']
    #allocation6 [shape = 's32[1]{0}', space=sflag, size = 0x4, scoped, tag = 'scoped memory for tpu_custom_call.1']
    #allocation7 [shape = 'u8[65536]{0}', space=vmem, size = 0x10000, scoped, tag = 'input window, operand 2, single buffered']
    #allocation8 [shape = 'u8[65536]{0}', space=vmem, size = 0x10000, scoped, tag = 'input window, operand 3, single buffered']
    #allocation9 [shape = 's32[1]{0}', space=sflag, size = 0x4, scoped, tag = 'scoped memory for tpu_custom_call.1']
    #allocation10 [shape = 'u8[8192]{0}', space=vmem, size = 0x2000, scoped, tag = 'output window, operand 0, single buffered']
    %11 = vsyncpa [#allocation3], 0
    %12 = vsyncpa [#allocation6], 0
    %13 = vsyncpa [#allocation9], 0
    %14 = vsyncpa [#allocation4], 0
    // Predicated region
    $region2: #{tpu_custom_call.1} parent=1 // pred_check
      _
    $region3: #{tpu_custom_call.1} parent=1 // pred_check_branch
      %16 = sbr.rel (0) target = $region5
    $region4: #{tpu_custom_call.1} parent=1 // pred_region
      %s18 = ssub.s32 256, 256
      %19 = vsyncadd [#allocation3], %s18
      %s20 = sshll.u32 [#allocation2], 4
      %s21 = int_to_ptr.vmem [resolvable:$true] %s20
      %26 = dma.hbm_to_vmem [thread:$0]  %s0, 256, %s21, [#allocation3], 128, 128, 8
    $region5: #{tpu_custom_call.1} parent=1 // pred_fallthru
      _
    // Predicated region
    $region6: #{tpu_custom_call.1} parent=1 // pred_check
      _
    $region7: #{tpu_custom_call.1} parent=1 // pred_check_branch
      %28 = sbr.rel (0) target = $region9
    $region8: #{tpu_custom_call.1} parent=1 // pred_region
      %s30 = ssub.s32 256, 256
      %31 = vsyncadd [#allocation6], %s30
      %s32 = sshll.u32 [#allocation5], 4
      %s33 = int_to_ptr.vmem [resolvable:$true] %s32
      %38 = dma.hbm_to_vmem [thread:$0]  %s1, 256, %s33, [#allocation6], 128, 128, 8
    $region9: #{tpu_custom_call.1} parent=1 // pred_fallthru
      _
    // Predicated region
    $region10: #{tpu_custom_call.1} parent=1 // pred_check
      _
    $region11: #{tpu_custom_call.1} parent=1 // pred_check_branch
      %40 = sbr.rel (0) target = $region13
    $region12: #{tpu_custom_call.1} parent=1 // pred_region
      %s42 = ssub.s32 2048, 2048
      %43 = vsyncadd [#allocation6], %s42
      %s44 = sshll.u32 [#allocation7], 4
      %s45 = int_to_ptr.vmem [resolvable:$true] %s44
      %50 = dma.hbm_to_vmem [thread:$0]  %s2, 2048, %s45, [#allocation6], 128, 128, 8
    $region13: #{tpu_custom_call.1} parent=1 // pred_fallthru
      _
    // Predicated region
    $region14: #{tpu_custom_call.1} parent=1 // pred_check
      _
    $region15: #{tpu_custom_call.1} parent=1 // pred_check_branch
      %52 = sbr.rel (0) target = $region17
    $region16: #{tpu_custom_call.1} parent=1 // pred_region
      %s54 = ssub.s32 2048, 2048
      %55 = vsyncadd [#allocation9], %s54
      %s56 = sshll.u32 [#allocation8], 4
      %s57 = int_to_ptr.vmem [resolvable:$true] %s56
      %62 = dma.hbm_to_vmem [thread:$0]  %s3, 2048, %s57, [#allocation9], 128, 128, 8
    $region17: #{tpu_custom_call.1} parent=1 // pred_fallthru
      _
    // Predicated region
    $region18: #{tpu_custom_call.1} parent=1 // pred_check
      _
    $region19: #{tpu_custom_call.1} parent=1 // pred_check_branch
      %64 = sbr.rel (0) target = $region21
    $region20: #{tpu_custom_call.1} parent=1 // pred_region
      _
    $region21: #{tpu_custom_call.1} parent=1 // pred_fallthru
      _
    // Predicated region
    $region22: #{tpu_custom_call.1} parent=1 // pred_check
      _
    $region23: #{tpu_custom_call.1} parent=1 // pred_check_branch
      %66 = sbr.rel (0) target = $region25
    $region24: #{tpu_custom_call.1} parent=1 // pred_region
      _
    $region25: #{tpu_custom_call.1} parent=1 // pred_fallthru
      _
    // Predicated region
    $region26: #{tpu_custom_call.1} parent=1 // pred_check
      _
    $region27: #{tpu_custom_call.1} parent=1 // pred_check_branch
      %68 = sbr.rel (0) target = $region29
    $region28: #{tpu_custom_call.1} parent=1 // pred_region
      %69 = dma.done [#allocation3], 256
    $region29: #{tpu_custom_call.1} parent=1 // pred_fallthru
      _
    // Predicated region
    $region30: #{tpu_custom_call.1} parent=1 // pred_check
      _
    $region31: #{tpu_custom_call.1} parent=1 // pred_check_branch
      %71 = sbr.rel (0) target = $region33
    $region32: #{tpu_custom_call.1} parent=1 // pred_region
      %72 = dma.done [#allocation6], 256
    $region33: #{tpu_custom_call.1} parent=1 // pred_fallthru
      _
    // Predicated region
    $region34: #{tpu_custom_call.1} parent=1 // pred_check
      _
    $region35: #{tpu_custom_call.1} parent=1 // pred_check_branch
      %74 = sbr.rel (0) target = $region37
    $region36: #{tpu_custom_call.1} parent=1 // pred_region
      %75 = dma.done [#allocation6], 2048
    $region37: #{tpu_custom_call.1} parent=1 // pred_fallthru
      _
    // Predicated region
    $region38: #{tpu_custom_call.1} parent=1 // pred_check
      _
    $region39: #{tpu_custom_call.1} parent=1 // pred_check_branch
      %77 = sbr.rel (0) target = $region41
    $region40: #{tpu_custom_call.1} parent=1 // pred_region
      %78 = dma.done [#allocation9], 2048
    $region41: #{tpu_custom_call.1} parent=1 // pred_fallthru
      _
    %v79 = vld [vmem:[#allocation2] sm:$0xff]
    %v80 = vld [vmem:[#allocation2 + $0x8] sm:$0xff]
    %v81 = vld [vmem:[#allocation7] sm:$0xff]
    %v82 = vld [vmem:[#allocation7 + $0x8] sm:$0xff]
    %v83 = vld [vmem:[#allocation7 + $0x10] sm:$0xff]
    %v84 = vld [vmem:[#allocation7 + $0x18] sm:$0xff]
    %v85 = vld [vmem:[#allocation7 + $0x20] sm:$0xff]
    %v86 = vld [vmem:[#allocation7 + $0x28] sm:$0xff]
    %v87 = vld [vmem:[#allocation7 + $0x30] sm:$0xff]
    %v88 = vld [vmem:[#allocation7 + $0x38] sm:$0xff]
    %v89 = vld [vmem:[#allocation7 + $0x40] sm:$0xff]
    %v90 = vld [vmem:[#allocation7 + $0x48] sm:$0xff]
    %v91 = vld [vmem:[#allocation7 + $0x50] sm:$0xff]
    %v92 = vld [vmem:[#allocation7 + $0x58] sm:$0xff]
    %v93 = vld [vmem:[#allocation7 + $0x60] sm:$0xff]
    %v94 = vld [vmem:[#allocation7 + $0x68] sm:$0xff]
    %v95 = vld [vmem:[#allocation7 + $0x70] sm:$0xff]
    %v96 = vld [vmem:[#allocation7 + $0x78] sm:$0xff]
    %v97 = vld [vmem:[%s4] sm:$0x1]
    %v98 = vld [vmem:[#allocation5] sm:$0xff]
    %v99 = vld [vmem:[#allocation5 + $0x8] sm:$0xff]
    %v100 = vld [vmem:[#allocation8] sm:$0xff]
    %v101 = vld [vmem:[#allocation8 + $0x8] sm:$0xff]
    %v102 = vld [vmem:[#allocation8 + $0x10] sm:$0xff]
    %v103 = vld [vmem:[#allocation8 + $0x18] sm:$0xff]
    %v104 = vld [vmem:[#allocation8 + $0x20] sm:$0xff]
    %v105 = vld [vmem:[#allocation8 + $0x28] sm:$0xff]
    %v106 = vld [vmem:[#allocation8 + $0x30] sm:$0xff]
    %v107 = vld [vmem:[#allocation8 + $0x38] sm:$0xff]
    %v108 = vld [vmem:[#allocation8 + $0x40] sm:$0xff]
    %v109 = vld [vmem:[#allocation8 + $0x48] sm:$0xff]
    %v110 = vld [vmem:[#allocation8 + $0x50] sm:$0xff]
    %v111 = vld [vmem:[#allocation8 + $0x58] sm:$0xff]
    %v112 = vld [vmem:[#allocation8 + $0x60] sm:$0xff]
    %v113 = vld [vmem:[#allocation8 + $0x68] sm:$0xff]
    %v114 = vld [vmem:[#allocation8 + $0x70] sm:$0xff]
    %v115 = vld [vmem:[#allocation8 + $0x78] sm:$0xff]
    %116 = vmatprep.subr.mxu0 0.0
    %117 = vmatpush1.msra.mxu0 %v115
    %118 = vmatprep.subr.mxu0 0.0
    %119 = vmatpush1.msra.mxu0 %v114
    %120 = vmatprep.subr.mxu0 0.0
    %121 = vmatpush1.msra.mxu0 %v113
    %122 = vmatprep.subr.mxu0 0.0
    %123 = vmatpush1.msra.mxu0 %v112
    %124 = vmatprep.subr.mxu0 0.0
    %125 = vmatpush1.msra.mxu0 %v111
    %126 = vmatprep.subr.mxu0 0.0
    %127 = vmatpush1.msra.mxu0 %v110
    %128 = vmatprep.subr.mxu0 0.0
    %129 = vmatpush1.msra.mxu0 %v109
    %130 = vmatprep.subr.mxu0 0.0
    %131 = vmatpush1.msra.mxu0 %v108
    %132 = vmatprep.subr.mxu0 0.0
    %133 = vmatpush1.msra.mxu0 %v107
    %134 = vmatprep.subr.mxu0 0.0
    %135 = vmatpush1.msra.mxu0 %v106
    %136 = vmatprep.subr.mxu0 0.0
    %137 = vmatpush1.msra.mxu0 %v105
    %138 = vmatprep.subr.mxu0 0.0
    %139 = vmatpush1.msra.mxu0 %v104
    %140 = vmatprep.subr.mxu0 0.0
    %141 = vmatpush1.msra.mxu0 %v103
    %142 = vmatprep.subr.mxu0 0.0
    %143 = vmatpush1.msra.mxu0 %v102
    %144 = vmatprep.subr.mxu0 0.0
    %145 = vmatpush1.msra.mxu0 %v101
    %146 = vmatprep.subr.mxu0 0.0
    %147 = vmatpush1.msra.mxu0 %v100
    %148 = vmatprep.subr.mxu0 0.0
    %149 = vmatpush2.msra.mxu0 0.0
    %150 = vmatprep.subr.mxu0 0.0
    %151 = vmatpush2.msra.mxu0 0.0
    %152 = vmatprep.subr.mxu0 0.0
    %153 = vmatpush2.msra.mxu0 0.0
    %154 = vmatprep.subr.mxu0 0.0
    %155 = vmatpush2.msra.mxu0 0.0
    %156 = vmatprep.subr.mxu0 0.0
    %157 = vmatpush2.msra.mxu0 0.0
    %158 = vmatprep.subr.mxu0 0.0
    %159 = vmatpush2.msra.mxu0 0.0
    %160 = vmatprep.subr.mxu0 0.0
    %161 = vmatpush2.msra.mxu0 0.0
    %162 = vmatprep.subr.mxu0 0.0
    %163 = vmatpush2.msra.mxu0 0.0
    %164 = vmatprep.subr.mxu0 0.0
    %165 = vmatpush2.msra.mxu0 0.0
    %166 = vmatprep.subr.mxu0 0.0
    %167 = vmatpush2.msra.mxu0 0.0
    %168 = vmatprep.subr.mxu0 0.0
    %169 = vmatpush2.msra.mxu0 0.0
    %170 = vmatprep.subr.mxu0 0.0
    %171 = vmatpush2.msra.mxu0 0.0
    %172 = vmatprep.subr.mxu0 0.0
    %173 = vmatpush2.msra.mxu0 0.0
    %174 = vmatprep.subr.mxu0 0.0
    %175 = vmatpush2.msra.mxu0 0.0
    %176 = vmatprep.subr.mxu0 0.0
    %177 = vmatpush2.msra.mxu0 0.0
    %178 = vmatprep.subr.mxu0 0.0
    %179 = vmatpush2.msra.mxu0 0.0
    %180 = vmatprep.mubr.f32.mxu0 0.0
    %181 = vmatmul.mubr.f32.gmra.mxu0 %v98
    %v182 = vpop.f32.mrf.mxu0
    %v183 = vadd.f32 0.0, %v182
    %v184 = vpop.f32.mrf.mxu0
    %185 = vmatprep.mubr.f32.mxu0 0.0
    %186 = vmatmul.mubr.f32.gmra.mxu0 %v99
    %v187 = vpop.f32.mrf.mxu0
    %v188 = vadd.f32 0.0, %v187
    %v189 = vpop.f32.mrf.mxu0
    %190 = vdwg.mxu0
    %v192 = vlaneseq
    %v193 = vshrl.u32 %v192, 7
    %v194 = vsub.s32 0, %v193
    %v195 = vrot.slane %v97, %v194
    %v197 = vmul.f32 %v195, %v183
    %v198 = vmul.f32 %v195, %v188
    %199 = vmatprep.subr.mxu0 0.0
    %200 = vmatpush1.msra.mxu0 %v96
    %201 = vmatprep.subr.mxu0 0.0
    %202 = vmatpush1.msra.mxu0 %v95
    %203 = vmatprep.subr.mxu0 0.0
    %204 = vmatpush1.msra.mxu0 %v94
    %205 = vmatprep.subr.mxu0 0.0
    %206 = vmatpush1.msra.mxu0 %v93
    %207 = vmatprep.subr.mxu0 0.0
    %208 = vmatpush1.msra.mxu0 %v92
    %209 = vmatprep.subr.mxu0 0.0
    %210 = vmatpush1.msra.mxu0 %v91
    %211 = vmatprep.subr.mxu0 0.0
    %212 = vmatpush1.msra.mxu0 %v90
    %213 = vmatprep.subr.mxu0 0.0
    %214 = vmatpush1.msra.mxu0 %v89
    %215 = vmatprep.subr.mxu0 0.0
    %216 = vmatpush1.msra.mxu0 %v88
    %217 = vmatprep.subr.mxu0 0.0
    %218 = vmatpush1.msra.mxu0 %v87
    %219 = vmatprep.subr.mxu0 0.0
    %220 = vmatpush1.msra.mxu0 %v86
    %221 = vmatprep.subr.mxu0 0.0
    %222 = vmatpush1.msra.mxu0 %v85
    %223 = vmatprep.subr.mxu0 0.0
    %224 = vmatpush1.msra.mxu0 %v84
    %225 = vmatprep.subr.mxu0 0.0
    %226 = vmatpush1.msra.mxu0 %v83
    %227 = vmatprep.subr.mxu0 0.0
    %228 = vmatpush1.msra.mxu0 %v82
    %229 = vmatprep.subr.mxu0 0.0
    %230 = vmatpush1.msra.mxu0 %v81
    %231 = vmatprep.subr.mxu0 0.0
    %232 = vmatpush2.msra.mxu0 0.0
    %233 = vmatprep.subr.mxu0 0.0
    %234 = vmatpush2.msra.mxu0 0.0
    %235 = vmatprep.subr.mxu0 0.0
    %236 = vmatpush2.msra.mxu0 0.0
    %237 = vmatprep.subr.mxu0 0.0
    %238 = vmatpush2.msra.mxu0 0.0
    %239 = vmatprep.subr.mxu0 0.0
    %240 = vmatpush2.msra.mxu0 0.0
    %241 = vmatprep.subr.mxu0 0.0
    %242 = vmatpush2.msra.mxu0 0.0
    %243 = vmatprep.subr.mxu0 0.0
    %244 = vmatpush2.msra.mxu0 0.0
    %245 = vmatprep.subr.mxu0 0.0
    %246 = vmatpush2.msra.mxu0 0.0
    %247 = vmatprep.subr.mxu0 0.0
    %248 = vmatpush2.msra.mxu0 0.0
    %249 = vmatprep.subr.mxu0 0.0
    %250 = vmatpush2.msra.mxu0 0.0
    %251 = vmatprep.subr.mxu0 0.0
    %252 = vmatpush2.msra.mxu0 0.0
    %253 = vmatprep.subr.mxu0 0.0
    %254 = vmatpush2.msra.mxu0 0.0
    %255 = vmatprep.subr.mxu0 0.0
    %256 = vmatpush2.msra.mxu0 0.0
    %257 = vmatprep.subr.mxu0 0.0
    %258 = vmatpush2.msra.mxu0 0.0
    %259 = vmatprep.subr.mxu0 0.0
    %260 = vmatpush2.msra.mxu0 0.0
    %261 = vmatprep.subr.mxu0 0.0
    %262 = vmatpush2.msra.mxu0 0.0
    %263 = vmatprep.mubr.f32.mxu0 0.0
    %264 = vmatmul.mubr.f32.gmra.mxu0 %v79
    %v265 = vpop.f32.mrf.mxu0
    %v266 = vadd.f32 %v197, %v265
    %v267 = vpop.f32.mrf.mxu0
    %268 = vmatprep.mubr.f32.mxu0 0.0
    %269 = vmatmul.mubr.f32.gmra.mxu0 %v80
    %v270 = vpop.f32.mrf.mxu0
    %v271 = vadd.f32 %v198, %v270
    %v272 = vpop.f32.mrf.mxu0
    %273 = vdwg.mxu0
    %v274 = vld [vmem:[%s5] sm:$0x1]
    %v276 = vlaneseq
    %v277 = vshrl.u32 %v276, 7
    %v278 = vsub.s32 0, %v277
    %v279 = vrot.slane %v274, %v278
    %v281 = vadd.f32 %v266, %v279
    %v282 = vadd.f32 %v271, %v279
    %283 = vst [vmem:[#allocation10] sm:$0xff] %v281
    %284 = vst [vmem:[#allocation10 + $0x8] sm:$0xff] %v282
    // Predicated region
    $region42: #{tpu_custom_call.1} parent=1 // pred_check
      _
    $region43: #{tpu_custom_call.1} parent=1 // pred_check_branch
      %286 = sbr.rel (0) target = $region45
    $region44: #{tpu_custom_call.1} parent=1 // pred_region
      %s288 = ssub.s32 256, 256
      %289 = vsyncadd [#allocation4], %s288
      %s290 = sshll.u32 [#allocation10], 4
      %s291 = int_to_ptr.vmem [resolvable:$true] %s290
      %296 = dma.vmem_to_hbm [thread:$0]  %s291, 256, %s6, [#allocation4], 128, 128, 8
    $region45: #{tpu_custom_call.1} parent=1 // pred_fallthru
      _
    // Predicated region
    $region46: #{tpu_custom_call.1} parent=1 // pred_check
      _
    $region47: #{tpu_custom_call.1} parent=1 // pred_check_branch
      %298 = sbr.rel (0) target = $region49
    $region48: #{tpu_custom_call.1} parent=1 // pred_region
      %299 = dma.done [#allocation4], 256
    $region49: #{tpu_custom_call.1} parent=1 // pred_fallthru
      _
    %300 = vsyncpa [#allocation3], 1
    %301 = vsyncpa [#allocation6], 1
    %302 = vsyncpa [#allocation9], 1
    %303 = vsyncpa [#allocation4], 1

</llo_original>
